<compile_context>
chip_gen: v7x
topology: tpu7x:2x2x1
jax: 0.10.0
libtpu: 0.0.40
codegen_flags: <defaults>
</compile_context>

<pallas_src>
import functools

import jax
import jax.numpy as jnp
import numpy as np
from jax import lax
from jax.experimental import pallas as pl
from jax.experimental.pallas import tpu as pltpu


def _softplus(x):
    # matches torch.nn.functional.softplus (threshold=20)
    return jnp.where(x > 20.0, x, jnp.log1p(jnp.exp(jnp.minimum(x, 20.0))))


# --------------------------------------------------------------------------- #
# kernel
# --------------------------------------------------------------------------- #
def _sigma_kernel(x_ref, w1_ref, b1_ref, w2_ref, b2_ref, w3_ref, b3_ref, o_ref,
                  *, kernel_size, win_len, window_mode, window_dtype):
    # x_ref : (Mb, T)  VMEM tile, time on the LANE axis; rows = flattened (b, n)
    # o_ref : (Mb, P)  pred_len on the LANE axis
    M, T = x_ref.shape
    K = kernel_size
    L = win_len
    inv_k = 1.0 / K

    x = x_ref[...]
    # Mean-center each series (variance is shift-invariant). One XLU lane-reduce
    # + one VPU sub; removes the E[x^2]-E[x]^2 cancellation risk.
    x0 = x - jnp.mean(x, axis=-1, keepdims=True)

    # Stack [x0 ; x0*x0] on the sublane axis -> one pass produces both the
    # window sum and the window sum-of-squares.
    lhs = jnp.concatenate([x0, x0 * x0], axis=0)                    # (2M, T)

    if window_mode == "matmul":
        # Banded 0/1 window matrix generated on the fly (cheap VPU compares;
        # avoids an HBM input + its VMEM buffers). Column l selects t=l+1..l+K.
        t_idx = lax.broadcasted_iota(jnp.int32, (T, L), 0)
        l_idx = lax.broadcasted_iota(jnp.int32, (T, L), 1)
        wwin = ((t_idx >= l_idx + 1) & (t_idx <= l_idx + K)).astype(window_dtype)
        both = jnp.dot(lhs.astype(window_dtype), wwin,
                       preferred_element_type=jnp.float32)          # (2M, L)
    else:
        # Hillis-Steele inclusive prefix sum along lanes (log2(T) roll+masked-add
        # passes, all VPU/XLU), then window sum s[l] = P[l+K] - P[l].
        lane = lax.broadcasted_iota(jnp.int32, lhs.shape, 1)
        p = lhs
        shift = 1
        while shift < T:
            p = p + jnp.where(lane >= shift, pltpu.roll(p, shift, axis=1), 0.0)
            shift *= 2
        ahead = pltpu.roll(p, (T - K) % T, axis=1)                   # lane l -> P[l+K]
        both = (ahead - p)[:, :L]                                    # (2M, L)

    s, ss = both[:M], both[M:]
    mean = s * inv_k
    var = ss * inv_k - mean * mean
    sigma = jnp.sqrt(jnp.maximum(var, 0.0)) + 1e-7                   # (M, L)

    # MLP per (batch, channel) row: (M,L)->(M,H)->(M,H)->(M,P); no transposes.
    # Weight dtype (f32 or bf16) decides the MXU operand precision; accum is f32.
    cdt = w1_ref.dtype
    h = jnp.maximum(
        jnp.dot(sigma.astype(cdt), w1_ref[...],
                preferred_element_type=jnp.float32) + b1_ref[...], 0.0)
    h = jnp.maximum(
        jnp.dot(h.astype(cdt), w2_ref[...],
                preferred_element_type=jnp.float32) + b2_ref[...], 0.0)
    h = (jnp.dot(h.astype(cdt), w3_ref[...],
                 preferred_element_type=jnp.float32) + b3_ref[...])   # (M, P)

    o_ref[...] = _softplus(h)


# --------------------------------------------------------------------------- #
# wrapper / tiling
# --------------------------------------------------------------------------- #
def _arch_config():
    try:
        kind = jax.devices()[0].device_kind.lower()
    except Exception:
        kind = ""
    if "v7" in kind or "7x" in kind:
        # 64 MiB VMEM, 2 TensorCores: modest blocks, keep >=2 grid steps (megacore).
        return dict(target_rows=256, vmem_bytes=48 << 20, min_grid_steps=2, row_gran=256)
    if "v6" in kind:
        # 128 MiB VMEM, single TC: big blocks, use the VMEM.
        return dict(target_rows=512, vmem_bytes=100 << 20, min_grid_steps=1, row_gran=256)
    if "v5e" in kind or "v5 lite" in kind or "v5lite" in kind:
        return dict(target_rows=512, vmem_bytes=100 << 20, min_grid_steps=1, row_gran=128)
    # unknown chip: conservative, keep the compiler's default VMEM limit
    return dict(target_rows=256, vmem_bytes=None, min_grid_steps=1, row_gran=128)


def _choose_rows_per_block(total_rows, cfg):
    mb = min(total_rows, cfg["target_rows"])
    if cfg["min_grid_steps"] > 1 and total_rows > 8:
        mb = min(mb, max(8, -(-total_rows // cfg["min_grid_steps"])))
    mb = -(-mb // 8) * 8                                   # round UP to sublane multiple
    if mb > cfg["row_gran"]:
        mb = (mb // cfg["row_gran"]) * cfg["row_gran"]     # snap large blocks to MXU rows
    return max(mb, 8)


def sigma_estimation(x_enc, params, *, kernel_size, pred_len,
                     window_mode=None, precision="highest", rows_per_block=None):
    """x_enc: (B, T, N) float32 -> (B, pred_len, N) float32."""
    B, T, N = x_enc.shape
    K = kernel_size
    L = T - K
    w1, b1, w2, b2, w3, b3 = params
    H = w1.shape[1]
    P = pred_len

    if window_mode is None:
        # banded matmul wastes ~T/K MXU MACs; switch to prefix sums for long series
        window_mode = "cumsum" if (T >= 512 and T // K >= 8) else "matmul"

    if precision == "bf16":
        w1c, w2c, w3c = (w.astype(jnp.bfloat16) for w in (w1, w2, w3))
        window_dtype = jnp.bfloat16       # exact for the 0/1 band; x0 is mean-centered
    else:
        w1c, w2c, w3c = w1, w2, w3
        window_dtype = jnp.float32

    cfg = _arch_config()
    R = B * N
    Mb = rows_per_block or _choose_rows_per_block(R, cfg)
    R_pad = -(-R // Mb) * Mb

    # 2-D lane-dense view: (B,N) collapsed into the MXU M dimension in HBM,
    # so no in-kernel reshape crosses the (8,128) tiling.
    x2d = jnp.transpose(x_enc, (0, 2, 1)).reshape(R, T)
    if R_pad != R:
        x2d = jnp.pad(x2d, ((0, R_pad - R), (0, 0)))   # zero rows -> sigma=1e-7, discarded

    kern = functools.partial(_sigma_kernel, kernel_size=K, win_len=L,
                             window_mode=window_mode, window_dtype=window_dtype)

    def build(use_buffered):
        def const_spec(shape):
            ndim = len(shape)
            idx = lambda b: (0,) * ndim
            if use_buffered:
                # constant-index weight blocks: single buffer, frees VMEM for bigger Mb
                return pl.BlockSpec(shape, idx, pipeline_mode=pl.Buffered(1))
            return pl.BlockSpec(shape, idx)

        return pl.pallas_call(
            kern,
            out_shape=jax.ShapeDtypeStruct((R_pad, P), jnp.float32),
            grid_spec=pltpu.PrefetchScalarGridSpec(
                num_scalar_prefetch=0,
                grid=(R_pad // Mb,),
                in_specs=[
                    pl.BlockSpec((Mb, T), lambda b: (b, 0)),
                    const_spec((L, H)),
                    const_spec((1, H)),
                    const_spec((H, H)),
                    const_spec((1, H)),
                    const_spec((H, P)),
                    const_spec((1, P)),
                ],
                out_specs=pl.BlockSpec((Mb, P), lambda b: (b, 0)),
            ),
            compiler_params=pltpu.CompilerParams(
                dimension_semantics=("parallel",),
                vmem_limit_bytes=cfg["vmem_bytes"],
            ),
        )

    args = (x2d, w1c, b1, w2c, b2, w3c, b3)
    use_buffered = hasattr(pl, "Buffered")
    try:
        out2d = build(use_buffered)(*args)
        out2d.block_until_ready()
    except Exception:
        if not use_buffered:
            raise
        # pipeline_mode=Buffered(1) not supported on this JAX/Mosaic: plain specs
        out2d = build(False)(*args)

    out = out2d[:R].reshape(B, N, P)
    return jnp.transpose(out, (0, 2, 1))                   # (B, pred_len, N)


# --------------------------------------------------------------------------- #
# params / pure-JAX reference
# --------------------------------------------------------------------------- #
def _init_params(key, in_dim, hidden, pred_len):
    # deterministic PyTorch-style uniform(-1/sqrt(fan_in), 1/sqrt(fan_in)) init
    def lin(k, fi, fo):
        k1, k2 = jax.random.split(k)
        bound = 1.0 / np.sqrt(fi)
        w = jax.random.uniform(k1, (fi, fo), jnp.float32, -bound, bound)
        b = jax.random.uniform(k2, (1, fo), jnp.float32, -bound, bound)
        return w, b

    k1, k2, k3 = jax.random.split(key, 3)
    w1, b1 = lin(k1, in_dim, hidden)
    w2, b2 = lin(k2, hidden, hidden)
    w3, b3 = lin(k3, hidden, pred_len)
    return (w1, b1, w2, b2, w3, b3)


def _reference(x_enc, params, kernel_size, pred_len):
    # pure-JAX reference for correctness checking
    w1, b1, w2, b2, w3, b3 = params
    B, T, N = x_enc.shape
    K, L = kernel_size, T - kernel_size
    wins = jnp.stack([x_enc[:, 1 + j: 1 + j + L, :] for j in range(K)], axis=-1)
    sigma = jnp.sqrt(jnp.maximum(jnp.var(wins, axis=-1), 0.0)) + 1e-7   # (B,L,N)
    h = jnp.transpose(sigma, (0, 2, 1))                                 # (B,N,L)
    h = jnp.maximum(h @ w1 + b1, 0.0)
    h = jnp.maximum(h @ w2 + b2, 0.0)
    h = h @ w3 + b3                                                     # (B,N,P)
    h = _softplus(h)
    return jnp.transpose(h, (0, 2, 1))[:, -pred_len:, :]


if __name__ == "__main__":
    key = jax.random.PRNGKey(0)
    k1, k2, k3, k4 = jax.random.split(key, 4)

    # --- test 1: small shapes, banded-matmul window path, full f32 (tight check) ---
    B, T, N = 2, 32, 4
    K, P, H = 8, 8, 32
    x = jax.random.normal(k1, (B, T, N), jnp.float32)
    params = _init_params(k2, T - K, H, P)
    out = jax.block_until_ready(
        sigma_estimation(x, params, kernel_size=K, pred_len=P))
    ref = _reference(x, params, K, P)
    assert out.shape == (B, P, N)
    np.testing.assert_allclose(np.asarray(out), np.asarray(ref),
                               rtol=1e-4, atol=1e-4)

    # --- test 2: prefix-sum window path + bf16 MLP operands (loose check) ---
    B2, T2, N2 = 4, 128, 8
    K2, P2, H2 = 32, 16, 64
    x2 = jax.random.normal(k3, (B2, T2, N2), jnp.float32)
    params2 = _init_params(k4, T2 - K2, H2, P2)
    out2 = jax.block_until_ready(
        sigma_estimation(x2, params2, kernel_size=K2, pred_len=P2,
                         window_mode="cumsum", precision="bf16"))
    ref2 = _reference(x2, params2, K2, P2)
    assert out2.shape == (B2, P2, N2)
    np.testing.assert_allclose(np.asarray(out2), np.asarray(ref2),
                               rtol=5e-2, atol=5e-2)

    print("KERNEL_OK")
</pallas_src>

<mosaic_0001>
module attributes {stable_mosaic.version = 11 : i64} {
  func.func @_sigma_kernel(%arg0: i32, %arg1: memref<8x32xf32, #tpu.memory_space<vmem>>, %arg2: memref<24x32xf32, #tpu.memory_space<vmem>>, %arg3: memref<1x32xf32, #tpu.memory_space<vmem>>, %arg4: memref<32x32xf32, #tpu.memory_space<vmem>>, %arg5: memref<1x32xf32, #tpu.memory_space<vmem>>, %arg6: memref<32x8xf32, #tpu.memory_space<vmem>>, %arg7: memref<1x8xf32, #tpu.memory_space<vmem>>, %arg8: memref<8x8xf32, #tpu.memory_space<vmem>>) attributes {dimension_semantics = [#tpu.dimension_semantics<parallel>], iteration_bounds = array<i64: 1>, scalar_prefetch = 0 : i64, scratch_operands = 0 : i64, tpu.core_type = #tpu.core_type<tc>, window_params = [{transform_indices = @transform_0, window_bounds = array<i64: 8, 32>}, {pipeline_mode = #tpu.pipeline_mode<synchronous>, transform_indices = @transform_1, window_bounds = array<i64: 24, 32>}, {pipeline_mode = #tpu.pipeline_mode<synchronous>, transform_indices = @transform_2, window_bounds = array<i64: 1, 32>}, {pipeline_mode = #tpu.pipeline_mode<synchronous>, transform_indices = @transform_3, window_bounds = array<i64: 32, 32>}, {pipeline_mode = #tpu.pipeline_mode<synchronous>, transform_indices = @transform_4, window_bounds = array<i64: 1, 32>}, {pipeline_mode = #tpu.pipeline_mode<synchronous>, transform_indices = @transform_5, window_bounds = array<i64: 32, 8>}, {pipeline_mode = #tpu.pipeline_mode<synchronous>, transform_indices = @transform_6, window_bounds = array<i64: 1, 8>}, {transform_indices = @transform_7, window_bounds = array<i64: 8, 8>}]} {
    %c0 = arith.constant 0 : index
    %c0_0 = arith.constant 0 : index
    %0 = vector.load %arg1[%c0, %c0_0] : memref<8x32xf32, #tpu.memory_space<vmem>>, vector<8x32xf32>
    %cst = arith.constant dense<0.000000e+00> : vector<8xf32>
    %1 = vector.multi_reduction <add>, %0, %cst [1] : vector<8x32xf32> to vector<8xf32>
    %2 = vector.shape_cast %1 : vector<8xf32> to vector<8x1xf32>
    %cst_1 = arith.constant 3.200000e+01 : f32
    %3 = vector.broadcast %cst_1 : f32 to vector<8x1xf32>
    %4 = arith.divf %2, %3 : vector<8x1xf32>
    %5 = vector.broadcast %4 : vector<8x1xf32> to vector<8x32xf32>
    %6 = arith.subf %0, %5 : vector<8x32xf32>
    %7 = arith.mulf %6, %6 : vector<8x32xf32>
    %8 = tpu.concatenate %6, %7 in 0 : vector<8x32xf32>, vector<8x32xf32> -> vector<16x32xf32>
    %9 = tpu.iota {dimensions = array<i32: 0>} : vector<32x24xi32>
    %10 = tpu.iota {dimensions = array<i32: 1>} : vector<32x24xi32>
    %c1_i32 = arith.constant 1 : i32
    %11 = vector.broadcast %c1_i32 : i32 to vector<32x24xi32>
    %12 = arith.addi %10, %11 : vector<32x24xi32>
    %13 = arith.cmpi sge, %9, %12 : vector<32x24xi32>
    %c8_i32 = arith.constant 8 : i32
    %14 = vector.broadcast %c8_i32 : i32 to vector<32x24xi32>
    %15 = arith.addi %10, %14 : vector<32x24xi32>
    %16 = arith.cmpi sle, %9, %15 : vector<32x24xi32>
    %17 = arith.andi %13, %16 : vector<32x24xi1>
    %18 = arith.extui %17 : vector<32x24xi1> to vector<32x24xi32>
    %19 = arith.sitofp %18 : vector<32x24xi32> to vector<32x24xf32>
    %cst_2 = arith.constant dense<0.000000e+00> : vector<16x24xf32>
    %20 = tpu.matmul %8, %19, %cst_2 {dimension_numbers = #tpu.dot_dimension_numbers<[1], [0], [0], [1], [0, 0, 1, 1], [], []>} : vector<16x32xf32>, vector<32x24xf32>, vector<16x24xf32> -> vector<16x24xf32>
    %21 = vector.extract_strided_slice %20 {offsets = [0, 0], sizes = [8, 24], strides = [1, 1]} : vector<16x24xf32> to vector<8x24xf32>
    %22 = vector.extract_strided_slice %20 {offsets = [8, 0], sizes = [8, 24], strides = [1, 1]} : vector<16x24xf32> to vector<8x24xf32>
    %cst_3 = arith.constant 1.250000e-01 : f32
    %23 = vector.broadcast %cst_3 : f32 to vector<8x24xf32>
    %24 = arith.mulf %21, %23 : vector<8x24xf32>
    %cst_4 = arith.constant 1.250000e-01 : f32
    %25 = vector.broadcast %cst_4 : f32 to vector<8x24xf32>
    %26 = arith.mulf %22, %25 : vector<8x24xf32>
    %27 = arith.mulf %24, %24 : vector<8x24xf32>
    %28 = arith.subf %26, %27 : vector<8x24xf32>
    %cst_5 = arith.constant 0.000000e+00 : f32
    %29 = vector.broadcast %cst_5 : f32 to vector<8x24xf32>
    %30 = arith.maximumf %28, %29 : vector<8x24xf32>
    %31 = math.sqrt %30 : vector<8x24xf32>
    %cst_6 = arith.constant 1.000000e-07 : f32
    %32 = vector.broadcast %cst_6 : f32 to vector<8x24xf32>
    %33 = arith.addf %31, %32 : vector<8x24xf32>
    %c0_7 = arith.constant 0 : index
    %c0_8 = arith.constant 0 : index
    %34 = vector.load %arg2[%c0_7, %c0_8] : memref<24x32xf32, #tpu.memory_space<vmem>>, vector<24x32xf32>
    %cst_9 = arith.constant dense<0.000000e+00> : vector<8x32xf32>
    %35 = tpu.matmul %33, %34, %cst_9 {dimension_numbers = #tpu.dot_dimension_numbers<[1], [0], [0], [1], [0, 0, 1, 1], [], []>} : vector<8x24xf32>, vector<24x32xf32>, vector<8x32xf32> -> vector<8x32xf32>
    %c0_10 = arith.constant 0 : index
    %c0_11 = arith.constant 0 : index
    %36 = vector.load %arg3[%c0_10, %c0_11] : memref<1x32xf32, #tpu.memory_space<vmem>>, vector<1x32xf32>
    %37 = vector.broadcast %36 : vector<1x32xf32> to vector<8x32xf32>
    %38 = arith.addf %35, %37 : vector<8x32xf32>
    %cst_12 = arith.constant 0.000000e+00 : f32
    %39 = vector.broadcast %cst_12 : f32 to vector<8x32xf32>
    %40 = arith.maximumf %38, %39 : vector<8x32xf32>
    %c0_13 = arith.constant 0 : index
    %c0_14 = arith.constant 0 : index
    %41 = vector.load %arg4[%c0_13, %c0_14] : memref<32x32xf32, #tpu.memory_space<vmem>>, vector<32x32xf32>
    %cst_15 = arith.constant dense<0.000000e+00> : vector<8x32xf32>
    %42 = tpu.matmul %40, %41, %cst_15 {dimension_numbers = #tpu.dot_dimension_numbers<[1], [0], [0], [1], [0, 0, 1, 1], [], []>} : vector<8x32xf32>, vector<32x32xf32>, vector<8x32xf32> -> vector<8x32xf32>
    %c0_16 = arith.constant 0 : index
    %c0_17 = arith.constant 0 : index
    %43 = vector.load %arg5[%c0_16, %c0_17] : memref<1x32xf32, #tpu.memory_space<vmem>>, vector<1x32xf32>
    %44 = vector.broadcast %43 : vector<1x32xf32> to vector<8x32xf32>
    %45 = arith.addf %42, %44 : vector<8x32xf32>
    %cst_18 = arith.constant 0.000000e+00 : f32
    %46 = vector.broadcast %cst_18 : f32 to vector<8x32xf32>
    %47 = arith.maximumf %45, %46 : vector<8x32xf32>
    %c0_19 = arith.constant 0 : index
    %c0_20 = arith.constant 0 : index
    %48 = vector.load %arg6[%c0_19, %c0_20] : memref<32x8xf32, #tpu.memory_space<vmem>>, vector<32x8xf32>
    %cst_21 = arith.constant dense<0.000000e+00> : vector<8x8xf32>
    %49 = tpu.matmul %47, %48, %cst_21 {dimension_numbers = #tpu.dot_dimension_numbers<[1], [0], [0], [1], [0, 0, 1, 1], [], []>} : vector<8x32xf32>, vector<32x8xf32>, vector<8x8xf32> -> vector<8x8xf32>
    %c0_22 = arith.constant 0 : index
    %c0_23 = arith.constant 0 : index
    %50 = vector.load %arg7[%c0_22, %c0_23] : memref<1x8xf32, #tpu.memory_space<vmem>>, vector<1x8xf32>
    %51 = vector.broadcast %50 : vector<1x8xf32> to vector<8x8xf32>
    %52 = arith.addf %49, %51 : vector<8x8xf32>
    %cst_24 = arith.constant 2.000000e+01 : f32
    %53 = vector.broadcast %cst_24 : f32 to vector<8x8xf32>
    %54 = arith.cmpf ogt, %52, %53 : vector<8x8xf32>
    %cst_25 = arith.constant 2.000000e+01 : f32
    %55 = vector.broadcast %cst_25 : f32 to vector<8x8xf32>
    %56 = arith.minimumf %52, %55 : vector<8x8xf32>
    %57 = math.exp %56 : vector<8x8xf32>
    %58 = math.log1p %57 : vector<8x8xf32>
    %59 = arith.select %54, %52, %58 : vector<8x8xi1>, vector<8x8xf32>
    %c0_26 = arith.constant 0 : index
    %c0_27 = arith.constant 0 : index
    %60 = vector.load %arg8[%c0_26, %c0_27] : memref<8x8xf32, #tpu.memory_space<vmem>>, vector<8x8xf32>
    tpu.vector_store %arg8[%c0_26, %c0_27], %59 {strides = array<i32>} : memref<8x8xf32, #tpu.memory_space<vmem>>, vector<8x8xf32>,
    return
  }
  func.func @transform_0(%arg0: i32) -> (i32, i32) {
    %c0_i32 = arith.constant 0 : i32
    %c0_i32_0 = arith.constant 0 : i32
    return %arg0, %c0_i32 : i32, i32
  }
  func.func @transform_1(%arg0: i32) -> (i32, i32) {
    %c0_i32 = arith.constant 0 : i32
    %c0_i32_0 = arith.constant 0 : i32
    %c0_i32_1 = arith.constant 0 : i32
    return %c0_i32, %c0_i32_0 : i32, i32
  }
  func.func @transform_2(%arg0: i32) -> (i32, i32) {
    %c0_i32 = arith.constant 0 : i32
    %c0_i32_0 = arith.constant 0 : i32
    %c0_i32_1 = arith.constant 0 : i32
    return %c0_i32, %c0_i32_0 : i32, i32
  }
  func.func @transform_3(%arg0: i32) -> (i32, i32) {
    %c0_i32 = arith.constant 0 : i32
    %c0_i32_0 = arith.constant 0 : i32
    %c0_i32_1 = arith.constant 0 : i32
    return %c0_i32, %c0_i32_0 : i32, i32
  }
  func.func @transform_4(%arg0: i32) -> (i32, i32) {
    %c0_i32 = arith.constant 0 : i32
    %c0_i32_0 = arith.constant 0 : i32
    %c0_i32_1 = arith.constant 0 : i32
    return %c0_i32, %c0_i32_0 : i32, i32
  }
  func.func @transform_5(%arg0: i32) -> (i32, i32) {
    %c0_i32 = arith.constant 0 : i32
    %c0_i32_0 = arith.constant 0 : i32
    %c0_i32_1 = arith.constant 0 : i32
    return %c0_i32, %c0_i32_0 : i32, i32
  }
  func.func @transform_6(%arg0: i32) -> (i32, i32) {
    %c0_i32 = arith.constant 0 : i32
    %c0_i32_0 = arith.constant 0 : i32
    %c0_i32_1 = arith.constant 0 : i32
    return %c0_i32, %c0_i32_0 : i32, i32
  }
  func.func @transform_7(%arg0: i32) -> (i32, i32) {
    %c0_i32 = arith.constant 0 : i32
    %c0_i32_0 = arith.constant 0 : i32
    return %arg0, %c0_i32 : i32, i32
  }
}

module attributes {stable_mosaic.version = 11 : i64} {
  func.func @_sigma_kernel(%arg0: i32, %arg1: memref<8x32xf32, #tpu.memory_space<vmem>>, %arg2: memref<24x32xf32, #tpu.memory_space<vmem>>, %arg3: memref<1x32xf32, #tpu.memory_space<vmem>>, %arg4: memref<32x32xf32, #tpu.memory_space<vmem>>, %arg5: memref<1x32xf32, #tpu.memory_space<vmem>>, %arg6: memref<32x8xf32, #tpu.memory_space<vmem>>, %arg7: memref<1x8xf32, #tpu.memory_space<vmem>>, %arg8: memref<8x8xf32, #tpu.memory_space<vmem>>) attributes {dimension_semantics = [#tpu.dimension_semantics<parallel>], iteration_bounds = array<i64: 1>, scalar_prefetch = 0 : i64, scratch_operands = 0 : i64, tpu.core_type = #tpu.core_type<tc>, window_params = [{transform_indices = @transform_0, window_bounds = array<i64: 8, 32>}, {pipeline_mode = #tpu.pipeline_mode<synchronous>, transform_indices = @transform_1, window_bounds = array<i64: 24, 32>}, {pipeline_mode = #tpu.pipeline_mode<synchronous>, transform_indices = @transform_2, window_bounds = array<i64: 1, 32>}, {pipeline_mode = #tpu.pipeline_mode<synchronous>, transform_indices = @transform_3, window_bounds = array<i64: 32, 32>}, {pipeline_mode = #tpu.pipeline_mode<synchronous>, transform_indices = @transform_4, window_bounds = array<i64: 1, 32>}, {pipeline_mode = #tpu.pipeline_mode<synchronous>, transform_indices = @transform_5, window_bounds = array<i64: 32, 8>}, {pipeline_mode = #tpu.pipeline_mode<synchronous>, transform_indices = @transform_6, window_bounds = array<i64: 1, 8>}, {transform_indices = @transform_7, window_bounds = array<i64: 8, 8>}]} {
    %c0 = arith.constant 0 : index
    %c0_0 = arith.constant 0 : index
    %0 = vector.load %arg1[%c0, %c0_0] : memref<8x32xf32, #tpu.memory_space<vmem>>, vector<8x32xf32>
    %cst = arith.constant dense<0.000000e+00> : vector<8xf32>
    %1 = vector.multi_reduction <add>, %0, %cst [1] : vector<8x32xf32> to vector<8xf32>
    %2 = vector.shape_cast %1 : vector<8xf32> to vector<8x1xf32>
    %cst_1 = arith.constant 3.200000e+01 : f32
    %3 = vector.broadcast %cst_1 : f32 to vector<8x1xf32>
    %4 = arith.divf %2, %3 : vector<8x1xf32>
    %5 = vector.broadcast %4 : vector<8x1xf32> to vector<8x32xf32>
    %6 = arith.subf %0, %5 : vector<8x32xf32>
    %7 = arith.mulf %6, %6 : vector<8x32xf32>
    %8 = tpu.concatenate %6, %7 in 0 : vector<8x32xf32>, vector<8x32xf32> -> vector<16x32xf32>
    %9 = tpu.iota {dimensions = array<i32: 0>} : vector<32x24xi32>
    %10 = tpu.iota {dimensions = array<i32: 1>} : vector<32x24xi32>
    %c1_i32 = arith.constant 1 : i32
    %11 = vector.broadcast %c1_i32 : i32 to vector<32x24xi32>
    %12 = arith.addi %10, %11 : vector<32x24xi32>
    %13 = arith.cmpi sge, %9, %12 : vector<32x24xi32>
    %c8_i32 = arith.constant 8 : i32
    %14 = vector.broadcast %c8_i32 : i32 to vector<32x24xi32>
    %15 = arith.addi %10, %14 : vector<32x24xi32>
    %16 = arith.cmpi sle, %9, %15 : vector<32x24xi32>
    %17 = arith.andi %13, %16 : vector<32x24xi1>
    %18 = arith.extui %17 : vector<32x24xi1> to vector<32x24xi32>
    %19 = arith.sitofp %18 : vector<32x24xi32> to vector<32x24xf32>
    %cst_2 = arith.constant dense<0.000000e+00> : vector<16x24xf32>
    %20 = tpu.matmul %8, %19, %cst_2 {dimension_numbers = #tpu.dot_dimension_numbers<[1], [0], [0], [1], [0, 0, 1, 1], [], []>} : vector<16x32xf32>, vector<32x24xf32>, vector<16x24xf32> -> vector<16x24xf32>
    %21 = vector.extract_strided_slice %20 {offsets = [0, 0], sizes = [8, 24], strides = [1, 1]} : vector<16x24xf32> to vector<8x24xf32>
    %22 = vector.extract_strided_slice %20 {offsets = [8, 0], sizes = [8, 24], strides = [1, 1]} : vector<16x24xf32> to vector<8x24xf32>
    %cst_3 = arith.constant 1.250000e-01 : f32
    %23 = vector.broadcast %cst_3 : f32 to vector<8x24xf32>
    %24 = arith.mulf %21, %23 : vector<8x24xf32>
    %cst_4 = arith.constant 1.250000e-01 : f32
    %25 = vector.broadcast %cst_4 : f32 to vector<8x24xf32>
    %26 = arith.mulf %22, %25 : vector<8x24xf32>
    %27 = arith.mulf %24, %24 : vector<8x24xf32>
    %28 = arith.subf %26, %27 : vector<8x24xf32>
    %cst_5 = arith.constant 0.000000e+00 : f32
    %29 = vector.broadcast %cst_5 : f32 to vector<8x24xf32>
    %30 = arith.maximumf %28, %29 : vector<8x24xf32>
    %31 = math.sqrt %30 : vector<8x24xf32>
    %cst_6 = arith.constant 1.000000e-07 : f32
    %32 = vector.broadcast %cst_6 : f32 to vector<8x24xf32>
    %33 = arith.addf %31, %32 : vector<8x24xf32>
    %c0_7 = arith.constant 0 : index
    %c0_8 = arith.constant 0 : index
    %34 = vector.load %arg2[%c0_7, %c0_8] : memref<24x32xf32, #tpu.memory_space<vmem>>, vector<24x32xf32>
    %cst_9 = arith.constant dense<0.000000e+00> : vector<8x32xf32>
    %35 = tpu.matmul %33, %34, %cst_9 {dimension_numbers = #tpu.dot_dimension_numbers<[1], [0], [0], [1], [0, 0, 1, 1], [], []>} : vector<8x24xf32>, vector<24x32xf32>, vector<8x32xf32> -> vector<8x32xf32>
    %c0_10 = arith.constant 0 : index
    %c0_11 = arith.constant 0 : index
    %36 = vector.load %arg3[%c0_10, %c0_11] : memref<1x32xf32, #tpu.memory_space<vmem>>, vector<1x32xf32>
    %37 = vector.broadcast %36 : vector<1x32xf32> to vector<8x32xf32>
    %38 = arith.addf %35, %37 : vector<8x32xf32>
    %cst_12 = arith.constant 0.000000e+00 : f32
    %39 = vector.broadcast %cst_12 : f32 to vector<8x32xf32>
    %40 = arith.maximumf %38, %39 : vector<8x32xf32>
    %c0_13 = arith.constant 0 : index
    %c0_14 = arith.constant 0 : index
    %41 = vector.load %arg4[%c0_13, %c0_14] : memref<32x32xf32, #tpu.memory_space<vmem>>, vector<32x32xf32>
    %cst_15 = arith.constant dense<0.000000e+00> : vector<8x32xf32>
    %42 = tpu.matmul %40, %41, %cst_15 {dimension_numbers = #tpu.dot_dimension_numbers<[1], [0], [0], [1], [0, 0, 1, 1], [], []>} : vector<8x32xf32>, vector<32x32xf32>, vector<8x32xf32> -> vector<8x32xf32>
    %c0_16 = arith.constant 0 : index
    %c0_17 = arith.constant 0 : index
    %43 = vector.load %arg5[%c0_16, %c0_17] : memref<1x32xf32, #tpu.memory_space<vmem>>, vector<1x32xf32>
    %44 = vector.broadcast %43 : vector<1x32xf32> to vector<8x32xf32>
    %45 = arith.addf %42, %44 : vector<8x32xf32>
    %cst_18 = arith.constant 0.000000e+00 : f32
    %46 = vector.broadcast %cst_18 : f32 to vector<8x32xf32>
    %47 = arith.maximumf %45, %46 : vector<8x32xf32>
    %c0_19 = arith.constant 0 : index
    %c0_20 = arith.constant 0 : index
    %48 = vector.load %arg6[%c0_19, %c0_20] : memref<32x8xf32, #tpu.memory_space<vmem>>, vector<32x8xf32>
    %cst_21 = arith.constant dense<0.000000e+00> : vector<8x8xf32>
    %49 = tpu.matmul %47, %48, %cst_21 {dimension_numbers = #tpu.dot_dimension_numbers<[1], [0], [0], [1], [0, 0, 1, 1], [], []>} : vector<8x32xf32>, vector<32x8xf32>, vector<8x8xf32> -> vector<8x8xf32>
    %c0_22 = arith.constant 0 : index
    %c0_23 = arith.constant 0 : index
    %50 = vector.load %arg7[%c0_22, %c0_23] : memref<1x8xf32, #tpu.memory_space<vmem>>, vector<1x8xf32>
    %51 = vector.broadcast %50 : vector<1x8xf32> to vector<8x8xf32>
    %52 = arith.addf %49, %51 : vector<8x8xf32>
    %cst_24 = arith.constant 2.000000e+01 : f32
    %53 = vector.broadcast %cst_24 : f32 to vector<8x8xf32>
    %54 = arith.cmpf ogt, %52, %53 : vector<8x8xf32>
    %cst_25 = arith.constant 2.000000e+01 : f32
    %55 = vector.broadcast %cst_25 : f32 to vector<8x8xf32>
    %56 = arith.minimumf %52, %55 : vector<8x8xf32>
    %57 = math.exp %56 : vector<8x8xf32>
    %58 = math.log1p %57 : vector<8x8xf32>
    %59 = arith.select %54, %52, %58 : vector<8x8xi1>, vector<8x8xf32>
    %c0_26 = arith.constant 0 : index
    %c0_27 = arith.constant 0 : index
    %60 = vector.load %arg8[%c0_26, %c0_27] : memref<8x8xf32, #tpu.memory_space<vmem>>, vector<8x8xf32>
    tpu.vector_store %arg8[%c0_26, %c0_27], %59 {strides = array<i32>} : memref<8x8xf32, #tpu.memory_space<vmem>>, vector<8x8xf32>,
    return
  }
  func.func @transform_0(%arg0: i32) -> (i32, i32) {
    %c0_i32 = arith.constant 0 : i32
    %c0_i32_0 = arith.constant 0 : i32
    return %arg0, %c0_i32 : i32, i32
  }
  func.func @transform_1(%arg0: i32) -> (i32, i32) {
    %c0_i32 = arith.constant 0 : i32
    %c0_i32_0 = arith.constant 0 : i32
    %c0_i32_1 = arith.constant 0 : i32
    return %c0_i32, %c0_i32_0 : i32, i32
  }
  func.func @transform_2(%arg0: i32) -> (i32, i32) {
    %c0_i32 = arith.constant 0 : i32
    %c0_i32_0 = arith.constant 0 : i32
    %c0_i32_1 = arith.constant 0 : i32
    return %c0_i32, %c0_i32_0 : i32, i32
  }
  func.func @transform_3(%arg0: i32) -> (i32, i32) {
    %c0_i32 = arith.constant 0 : i32
    %c0_i32_0 = arith.constant 0 : i32
    %c0_i32_1 = arith.constant 0 : i32
    return %c0_i32, %c0_i32_0 : i32, i32
  }
  func.func @transform_4(%arg0: i32) -> (i32, i32) {
    %c0_i32 = arith.constant 0 : i32
    %c0_i32_0 = arith.constant 0 : i32
    %c0_i32_1 = arith.constant 0 : i32
    return %c0_i32, %c0_i32_0 : i32, i32
  }
  func.func @transform_5(%arg0: i32) -> (i32, i32) {
    %c0_i32 = arith.constant 0 : i32
    %c0_i32_0 = arith.constant 0 : i32
    %c0_i32_1 = arith.constant 0 : i32
    return %c0_i32, %c0_i32_0 : i32, i32
  }
  func.func @transform_6(%arg0: i32) -> (i32, i32) {
    %c0_i32 = arith.constant 0 : i32
    %c0_i32_0 = arith.constant 0 : i32
    %c0_i32_1 = arith.constant 0 : i32
    return %c0_i32, %c0_i32_0 : i32, i32
  }
  func.func @transform_7(%arg0: i32) -> (i32, i32) {
    %c0_i32 = arith.constant 0 : i32
    %c0_i32_0 = arith.constant 0 : i32
    return %arg0, %c0_i32 : i32, i32
  }
}

</mosaic_0001>

<llo_original>
// kernel: tpu_custom_call.1
$region0: #{tpu_custom_call.1}
  #allocation0 [shape = 'u32[]', space=smem, size = 0x4, offset = 0x4, fixed_abs, tag = 'smem constant byte address 0x4 - core index']
  #allocation1 [shape = 'u32[144,128]{1,0:T(1,128)}', space=vmem, size = 0x12000, scoped, tag = 'internal scratch']
  %s0 = inlined_call_operand.vmem [shape: f32[8,32], index: 0, kind: input, shape index: {}]
  %s1 = inlined_call_operand.hbm [shape: f32[24,32], index: 1, kind: input, shape index: {}]
  %s2 = inlined_call_operand.vmem [shape: f32[1,32], index: 2, kind: input, shape index: {}]
  %s3 = inlined_call_operand.vmem [shape: f32[32,32], index: 3, kind: input, shape index: {}]
  %s4 = inlined_call_operand.vmem [shape: f32[1,32], index: 4, kind: input, shape index: {}]
  %s5 = inlined_call_operand.vmem [shape: f32[32,8], index: 5, kind: input, shape index: {}]
  %s6 = inlined_call_operand.vmem [shape: f32[1,8], index: 6, kind: input, shape index: {}]
  %s7 = inlined_call_operand.hbm [shape: f32[8,8], index: 7, kind: output, shape index: {}]
  %s8 = sld [smem:[#allocation0]]
  $region42: #{tpu_custom_call.1} parent=0
    _
  %s10 = ssub.s32 1, %s8
  %s11 = scalar_select 0, %s10, %s8
  $region1: #{tpu_custom_call.1} parent=0
    #allocation2 [shape = 'u8[12288]{0}', space=vmem, size = 0x3000, scoped, tag = 'input window, operand 1, single buffered']
    #allocation3 [shape = 's32[1]{0}', space=sflag, size = 0x4, scoped, tag = 'scoped memory for tpu_custom_call.1']
    #allocation4 [shape = 's32[1]{0}', space=sflag, size = 0x4, scoped, tag = 'scoped memory for tpu_custom_call.1']
    #allocation5 [shape = 'u8[4096]{0}', space=vmem, size = 0x1000, scoped, tag = 'output window, operand 0, single buffered']
    %12 = vsyncpa [#allocation3], 0
    %13 = vsyncpa [#allocation4], 0
    // Predicated region
    $region2: #{tpu_custom_call.1} parent=1 // pred_check
      _
    $region3: #{tpu_custom_call.1} parent=1 // pred_check_branch
      %15 = sbr.rel (0) target = $region5
    $region4: #{tpu_custom_call.1} parent=1 // pred_region
      _
    $region5: #{tpu_custom_call.1} parent=1 // pred_fallthru
      _
    // Predicated region
    $region6: #{tpu_custom_call.1} parent=1 // pred_check
      _
    $region7: #{tpu_custom_call.1} parent=1 // pred_check_branch
      %17 = sbr.rel (0) target = $region9
    $region8: #{tpu_custom_call.1} parent=1 // pred_region
      %s19 = ssub.s32 384, 384
      %20 = vsyncadd [#allocation3], %s19
      %s21 = sshll.u32 [#allocation2], 4
      %s22 = int_to_ptr.vmem [resolvable:$true] %s21
      %27 = dma.hbm_to_vmem [thread:$0]  %s1, 384, %s22, [#allocation3], 128, 128, 8
    $region9: #{tpu_custom_call.1} parent=1 // pred_fallthru
      _
    // Predicated region
    $region10: #{tpu_custom_call.1} parent=1 // pred_check
      _
    $region11: #{tpu_custom_call.1} parent=1 // pred_check_branch
      %29 = sbr.rel (0) target = $region13
    $region12: #{tpu_custom_call.1} parent=1 // pred_region
      _
    $region13: #{tpu_custom_call.1} parent=1 // pred_fallthru
      _
    // Predicated region
    $region14: #{tpu_custom_call.1} parent=1 // pred_check
      _
    $region15: #{tpu_custom_call.1} parent=1 // pred_check_branch
      %31 = sbr.rel (0) target = $region17
    $region16: #{tpu_custom_call.1} parent=1 // pred_region
      _
    $region17: #{tpu_custom_call.1} parent=1 // pred_fallthru
      _
    // Predicated region
    $region18: #{tpu_custom_call.1} parent=1 // pred_check
      _
    $region19: #{tpu_custom_call.1} parent=1 // pred_check_branch
      %33 = sbr.rel (0) target = $region21
    $region20: #{tpu_custom_call.1} parent=1 // pred_region
      _
    $region21: #{tpu_custom_call.1} parent=1 // pred_fallthru
      _
    // Predicated region
    $region22: #{tpu_custom_call.1} parent=1 // pred_check
      _
    $region23: #{tpu_custom_call.1} parent=1 // pred_check_branch
      %35 = sbr.rel (0) target = $region25
    $region24: #{tpu_custom_call.1} parent=1 // pred_region
      _
    $region25: #{tpu_custom_call.1} parent=1 // pred_fallthru
      _
    // Predicated region
    $region26: #{tpu_custom_call.1} parent=1 // pred_check
      _
    $region27: #{tpu_custom_call.1} parent=1 // pred_check_branch
      %37 = sbr.rel (0) target = $region29
    $region28: #{tpu_custom_call.1} parent=1 // pred_region
      _
    $region29: #{tpu_custom_call.1} parent=1 // pred_fallthru
      _
    // Predicated region
    $region30: #{tpu_custom_call.1} parent=1 // pred_check
      _
    $region31: #{tpu_custom_call.1} parent=1 // pred_check_branch
      %39 = sbr.rel (0) target = $region33
    $region32: #{tpu_custom_call.1} parent=1 // pred_region
      %40 = dma.done [#allocation3], 384
    $region33: #{tpu_custom_call.1} parent=1 // pred_fallthru
      _
    %v41 = vld [vmem:[%s0] sm:$0xff]
    %vm42 = vcmask 261120
    %v43 = vsel %vm42, %v41, 0.0
    %44 = vadd.xlane.f32.xlu0 %v43
    %v45 = vpop.xlane.xlu0 %44
    %v46 = vrcp.pop 32.0
    %v47 = vmul.f32 %v45, %v46
    %v48 = vsub.f32 %v41, %v47
    %v49 = vmul.f32 %v48, %v48
    %v50 = vlaneseq
    %v51 = vshrl.u32 %v50, 7
    %v52 = vadd.s32 %v51, 8
    %v53 = vadd.s32 %v51, 16
    %v54 = vadd.s32 %v51, 24
    %v55 = vlaneseq
    %v56 = vand.u32 %v55, 127
    %v57 = vadd.s32 %v56, 1
    %vm58 = vcmp.ge.s32.totalorder %v51, %v57
    %vm59 = vcmp.ge.s32.totalorder %v52, %v57
    %vm60 = vcmp.ge.s32.totalorder %v53, %v57
    %vm61 = vcmp.ge.s32.totalorder %v54, %v57
    %v62 = vadd.s32 %v56, 8
    %vm63 = vcmp.le.s32.totalorder %v51, %v62
    %vm64 = vcmp.le.s32.totalorder %v52, %v62
    %vm65 = vcmp.le.s32.totalorder %v53, %v62
    %vm66 = vcmp.le.s32.totalorder %v54, %v62
    %vm67 = vmand %vm58, %vm63
    %vm68 = vmand %vm59, %vm64
    %vm69 = vmand %vm60, %vm65
    %vm70 = vmand %vm61, %vm66
    %v71 = vsel %vm67, 1, 0
    %v72 = vsel %vm68, 1, 0
    %v73 = vsel %vm69, 1, 0
    %v74 = vsel %vm70, 1, 0
    %v75 = vcvt.s32.f32 %v71
    %v76 = vcvt.s32.f32 %v72
    %v77 = vcvt.s32.f32 %v73
    %v78 = vcvt.s32.f32 %v74
    %v80 = vsel %vm42, %v48, 0
    %v83 = vsel %vm42, %v49, 0
    %85 = vmatprep.subr.mxu0 0.0
    %86 = vmatpush1.msra.mxu0 %v75
    %87 = vmatprep.subr.mxu0 0.0
    %88 = vmatpush1.msra.mxu0 %v76
    %89 = vmatprep.subr.mxu0 0.0
    %90 = vmatpush1.msra.mxu0 %v77
    %91 = vmatprep.subr.mxu0 0.0
    %92 = vmatpush1.msra.mxu0 %v78
    %93 = vmatprep.subr.mxu0 0.0
    %94 = vmatpush1.msra.mxu0 0.0
    %95 = vmatprep.subr.mxu0 0.0
    %96 = vmatpush1.msra.mxu0 0.0
    %97 = vmatprep.subr.mxu0 0.0
    %98 = vmatpush1.msra.mxu0 0.0
    %99 = vmatprep.subr.mxu0 0.0
    %100 = vmatpush1.msra.mxu0 0.0
    %101 = vmatprep.subr.mxu0 0.0
    %102 = vmatpush1.msra.mxu0 0.0
    %103 = vmatprep.subr.mxu0 0.0
    %104 = vmatpush1.msra.mxu0 0.0
    %105 = vmatprep.subr.mxu0 0.0
    %106 = vmatpush1.msra.mxu0 0.0
    %107 = vmatprep.subr.mxu0 0.0
    %108 = vmatpush1.msra.mxu0 0.0
    %109 = vmatprep.subr.mxu0 0.0
    %110 = vmatpush1.msra.mxu0 0.0
    %111 = vmatprep.subr.mxu0 0.0
    %112 = vmatpush1.msra.mxu0 0.0
    %113 = vmatprep.subr.mxu0 0.0
    %114 = vmatpush1.msra.mxu0 0.0
    %115 = vmatprep.subr.mxu0 0.0
    %116 = vmatpush1.msra.mxu0 0.0
    %117 = vmatprep.subr.mxu0 0.0
    %118 = vmatpush1.msra.mxu0 0.0
    %119 = vmatprep.subr.mxu0 0.0
    %120 = vmatpush1.msra.mxu0 0.0
    %121 = vmatprep.subr.mxu0 0.0
    %122 = vmatpush1.msra.mxu0 0.0
    %123 = vmatprep.subr.mxu0 0.0
    %124 = vmatpush1.msra.mxu0 0.0
    %125 = vmatprep.subr.mxu0 0.0
    %126 = vmatpush1.msra.mxu0 0.0
    %127 = vmatprep.subr.mxu0 0.0
    %128 = vmatpush1.msra.mxu0 0.0
    %129 = vmatprep.subr.mxu0 0.0
    %130 = vmatpush1.msra.mxu0 0.0
    %131 = vmatprep.subr.mxu0 0.0
    %132 = vmatpush1.msra.mxu0 0.0
    %133 = vmatprep.subr.mxu0 0.0
    %134 = vmatpush1.msra.mxu0 0.0
    %135 = vmatprep.subr.mxu0 0.0
    %136 = vmatpush1.msra.mxu0 0.0
    %137 = vmatprep.subr.mxu0 0.0
    %138 = vmatpush1.msra.mxu0 0.0
    %139 = vmatprep.subr.mxu0 0.0
    %140 = vmatpush1.msra.mxu0 0.0
    %141 = vmatprep.subr.mxu0 0.0
    %142 = vmatpush1.msra.mxu0 0.0
    %143 = vmatprep.subr.mxu0 0.0
    %144 = vmatpush1.msra.mxu0 0.0
    %145 = vmatprep.subr.mxu0 0.0
    %146 = vmatpush1.msra.mxu0 0.0
    %147 = vmatprep.subr.mxu0 0.0
    %148 = vmatpush1.msra.mxu0 0.0
    %149 = vmatprep.mubr.f32.mxu0 0.0
    %150 = vmatmul.mubr.f32.gmra.mrb[0].mxu0 %v80
    %v151 = vpop.f32.mrb[0].mxu0
    %v152 = vadd.f32 0.0, %v151
    %v153 = vpop.f32.mrb[0].mxu0
    %154 = vmatprep.mubr.f32.mxu0 0.0
    %155 = vmatmul.mubr.f32.gmra.mrb[0].mxu0 %v83
    %v156 = vpop.f32.mrb[0].mxu0
    %v157 = vadd.f32 0.0, %v156
    %v158 = vpop.f32.mrb[0].mxu0
    %159 = vdwg.mxu0
    %v160 = vmul.f32 %v152, 0.125
    %v161 = vmul.f32 %v157, 0.125
    %v162 = vmul.f32 %v160, %v160
    %v163 = vsub.f32 %v161, %v162
    %v164 = vmax.f32 %v163, 0.0
    %v165 = vrsqrt.pop %v164
    %v166 = vmul.f32 %v164, %v165
    %vm167 = vcmp.eq.f32.partialorder %v164, inf
    %v168 = vsel %vm167, %v164, %v166
    %vm169 = vcmp.eq.f32.partialorder %v164, 0.0
    %v170 = vand.u32 %v164, 2147483648
    %v171 = vsel %vm169, %v170, %v168
    %v172 = vadd.f32 %v171, 1e-07
    %v173 = vld [vmem:[#allocation2] sm:$0xff]
    %v174 = vld [vmem:[#allocation2 + $0x8] sm:$0xff]
    %v175 = vld [vmem:[#allocation2 + $0x10] sm:$0xff]
    %v176 = vld [vmem:[%s2] sm:$0x1]
    %v178 = vlaneseq
    %v179 = vshrl.u32 %v178, 7
    %v180 = vsub.s32 0, %v179
    %v181 = vrot.slane %v176, %v180
    %vm183 = vcmask 195584
    %v185 = vsel %vm183, %v172, 0
    %187 = vmatprep.subr.mxu0 0.0
    %188 = vmatpush1.msra.mxu0 %v173
    %189 = vmatprep.subr.mxu0 0.0
    %190 = vmatpush1.msra.mxu0 %v174
    %191 = vmatprep.subr.mxu0 0.0
    %192 = vmatpush1.msra.mxu0 %v175
    %193 = vmatprep.subr.mxu0 0.0
    %194 = vmatpush1.msra.mxu0 0.0
    %195 = vmatprep.subr.mxu0 0.0
    %196 = vmatpush1.msra.mxu0 0.0
    %197 = vmatprep.subr.mxu0 0.0
    %198 = vmatpush1.msra.mxu0 0.0
    %199 = vmatprep.subr.mxu0 0.0
    %200 = vmatpush1.msra.mxu0 0.0
    %201 = vmatprep.subr.mxu0 0.0
    %202 = vmatpush1.msra.mxu0 0.0
    %203 = vmatprep.subr.mxu0 0.0
    %204 = vmatpush1.msra.mxu0 0.0
    %205 = vmatprep.subr.mxu0 0.0
    %206 = vmatpush1.msra.mxu0 0.0
    %207 = vmatprep.subr.mxu0 0.0
    %208 = vmatpush1.msra.mxu0 0.0
    %209 = vmatprep.subr.mxu0 0.0
    %210 = vmatpush1.msra.mxu0 0.0
    %211 = vmatprep.subr.mxu0 0.0
    %212 = vmatpush1.msra.mxu0 0.0
    %213 = vmatprep.subr.mxu0 0.0
    %214 = vmatpush1.msra.mxu0 0.0
    %215 = vmatprep.subr.mxu0 0.0
    %216 = vmatpush1.msra.mxu0 0.0
    %217 = vmatprep.subr.mxu0 0.0
    %218 = vmatpush1.msra.mxu0 0.0
    %219 = vmatprep.subr.mxu0 0.0
    %220 = vmatpush1.msra.mxu0 0.0
    %221 = vmatprep.subr.mxu0 0.0
    %222 = vmatpush1.msra.mxu0 0.0
    %223 = vmatprep.subr.mxu0 0.0
    %224 = vmatpush1.msra.mxu0 0.0
    %225 = vmatprep.subr.mxu0 0.0
    %226 = vmatpush1.msra.mxu0 0.0
    %227 = vmatprep.subr.mxu0 0.0
    %228 = vmatpush1.msra.mxu0 0.0
    %229 = vmatprep.subr.mxu0 0.0
    %230 = vmatpush1.msra.mxu0 0.0
    %231 = vmatprep.subr.mxu0 0.0
    %232 = vmatpush1.msra.mxu0 0.0
    %233 = vmatprep.subr.mxu0 0.0
    %234 = vmatpush1.msra.mxu0 0.0
    %235 = vmatprep.subr.mxu0 0.0
    %236 = vmatpush1.msra.mxu0 0.0
    %237 = vmatprep.subr.mxu0 0.0
    %238 = vmatpush1.msra.mxu0 0.0
    %239 = vmatprep.subr.mxu0 0.0
    %240 = vmatpush1.msra.mxu0 0.0
    %241 = vmatprep.subr.mxu0 0.0
    %242 = vmatpush1.msra.mxu0 0.0
    %243 = vmatprep.subr.mxu0 0.0
    %244 = vmatpush1.msra.mxu0 0.0
    %245 = vmatprep.subr.mxu0 0.0
    %246 = vmatpush1.msra.mxu0 0.0
    %247 = vmatprep.subr.mxu0 0.0
    %248 = vmatpush1.msra.mxu0 0.0
    %249 = vmatprep.subr.mxu0 0.0
    %250 = vmatpush1.msra.mxu0 0.0
    %251 = vmatprep.mubr.f32.mxu0 0.0
    %252 = vmatmul.mubr.f32.gmra.mrb[0].mxu0 %v185
    %v253 = vpop.f32.mrb[0].mxu0
    %v254 = vadd.f32 %v181, %v253
    %v255 = vpop.f32.mrb[0].mxu0
    %256 = vdwg.mxu0
    %v257 = vmax.f32 %v254, 0.0
    %v258 = vld [vmem:[%s3] sm:$0xff]
    %v259 = vld [vmem:[%s3 + $0x8] sm:$0xff]
    %v260 = vld [vmem:[%s3 + $0x10] sm:$0xff]
    %v261 = vld [vmem:[%s3 + $0x18] sm:$0xff]
    %v262 = vld [vmem:[%s4] sm:$0x1]
    %v264 = vlaneseq
    %v265 = vshrl.u32 %v264, 7
    %v266 = vsub.s32 0, %v265
    %v267 = vrot.slane %v262, %v266
    %v270 = vsel %vm42, %v257, 0
    %272 = vmatprep.subr.mxu0 0.0
    %273 = vmatpush1.msra.mxu0 %v258
    %274 = vmatprep.subr.mxu0 0.0
    %275 = vmatpush1.msra.mxu0 %v259
    %276 = vmatprep.subr.mxu0 0.0
    %277 = vmatpush1.msra.mxu0 %v260
    %278 = vmatprep.subr.mxu0 0.0
    %279 = vmatpush1.msra.mxu0 %v261
    %280 = vmatprep.subr.mxu0 0.0
    %281 = vmatpush1.msra.mxu0 0.0
    %282 = vmatprep.subr.mxu0 0.0
    %283 = vmatpush1.msra.mxu0 0.0
    %284 = vmatprep.subr.mxu0 0.0
    %285 = vmatpush1.msra.mxu0 0.0
    %286 = vmatprep.subr.mxu0 0.0
    %287 = vmatpush1.msra.mxu0 0.0
    %288 = vmatprep.subr.mxu0 0.0
    %289 = vmatpush1.msra.mxu0 0.0
    %290 = vmatprep.subr.mxu0 0.0
    %291 = vmatpush1.msra.mxu0 0.0
    %292 = vmatprep.subr.mxu0 0.0
    %293 = vmatpush1.msra.mxu0 0.0
    %294 = vmatprep.subr.mxu0 0.0
    %295 = vmatpush1.msra.mxu0 0.0
    %296 = vmatprep.subr.mxu0 0.0
    %297 = vmatpush1.msra.mxu0 0.0
    %298 = vmatprep.subr.mxu0 0.0
    %299 = vmatpush1.msra.mxu0 0.0
    %300 = vmatprep.subr.mxu0 0.0
    %301 = vmatpush1.msra.mxu0 0.0
    %302 = vmatprep.subr.mxu0 0.0
    %303 = vmatpush1.msra.mxu0 0.0
    %304 = vmatprep.subr.mxu0 0.0
    %305 = vmatpush1.msra.mxu0 0.0
    %306 = vmatprep.subr.mxu0 0.0
    %307 = vmatpush1.msra.mxu0 0.0
    %308 = vmatprep.subr.mxu0 0.0
    %309 = vmatpush1.msra.mxu0 0.0
    %310 = vmatprep.subr.mxu0 0.0
    %311 = vmatpush1.msra.mxu0 0.0
    %312 = vmatprep.subr.mxu0 0.0
    %313 = vmatpush1.msra.mxu0 0.0
    %314 = vmatprep.subr.mxu0 0.0
    %315 = vmatpush1.msra.mxu0 0.0
    %316 = vmatprep.subr.mxu0 0.0
    %317 = vmatpush1.msra.mxu0 0.0
    %318 = vmatprep.subr.mxu0 0.0
    %319 = vmatpush1.msra.mxu0 0.0
    %320 = vmatprep.subr.mxu0 0.0
    %321 = vmatpush1.msra.mxu0 0.0
    %322 = vmatprep.subr.mxu0 0.0
    %323 = vmatpush1.msra.mxu0 0.0
    %324 = vmatprep.subr.mxu0 0.0
    %325 = vmatpush1.msra.mxu0 0.0
    %326 = vmatprep.subr.mxu0 0.0
    %327 = vmatpush1.msra.mxu0 0.0
    %328 = vmatprep.subr.mxu0 0.0
    %329 = vmatpush1.msra.mxu0 0.0
    %330 = vmatprep.subr.mxu0 0.0
    %331 = vmatpush1.msra.mxu0 0.0
    %332 = vmatprep.subr.mxu0 0.0
    %333 = vmatpush1.msra.mxu0 0.0
    %334 = vmatprep.subr.mxu0 0.0
    %335 = vmatpush1.msra.mxu0 0.0
    %336 = vmatprep.mubr.f32.mxu0 0.0
    %337 = vmatmul.mubr.f32.gmra.mrb[0].mxu0 %v270
    %v338 = vpop.f32.mrb[0].mxu0
    %v339 = vadd.f32 %v267, %v338
    %v340 = vpop.f32.mrb[0].mxu0
    %341 = vdwg.mxu0
    %v342 = vmax.f32 %v339, 0.0
    %v343 = vld [vmem:[%s5] sm:$0xff]
    %v344 = vld [vmem:[%s5 + $0x8] sm:$0xff]
    %v345 = vld [vmem:[%s5 + $0x10] sm:$0xff]
    %v346 = vld [vmem:[%s5 + $0x18] sm:$0xff]
    %v347 = vld [vmem:[%s6] sm:$0x1]
    %v349 = vlaneseq
    %v350 = vshrl.u32 %v349, 7
    %v351 = vsub.s32 0, %v350
    %v352 = vrot.slane %v347, %v351
    %v355 = vsel %vm42, %v342, 0
    %357 = vmatprep.subr.mxu0 0.0
    %358 = vmatpush1.msra.mxu0 %v343
    %359 = vmatprep.subr.mxu0 0.0
    %360 = vmatpush1.msra.mxu0 %v344
    %361 = vmatprep.subr.mxu0 0.0
    %362 = vmatpush1.msra.mxu0 %v345
    %363 = vmatprep.subr.mxu0 0.0
    %364 = vmatpush1.msra.mxu0 %v346
    %365 = vmatprep.subr.mxu0 0.0
    %366 = vmatpush1.msra.mxu0 0.0
    %367 = vmatprep.subr.mxu0 0.0
    %368 = vmatpush1.msra.mxu0 0.0
    %369 = vmatprep.subr.mxu0 0.0
    %370 = vmatpush1.msra.mxu0 0.0
    %371 = vmatprep.subr.mxu0 0.0
    %372 = vmatpush1.msra.mxu0 0.0
    %373 = vmatprep.subr.mxu0 0.0
    %374 = vmatpush1.msra.mxu0 0.0
    %375 = vmatprep.subr.mxu0 0.0
    %376 = vmatpush1.msra.mxu0 0.0
    %377 = vmatprep.subr.mxu0 0.0
    %378 = vmatpush1.msra.mxu0 0.0
    %379 = vmatprep.subr.mxu0 0.0
    %380 = vmatpush1.msra.mxu0 0.0
    %381 = vmatprep.subr.mxu0 0.0
    %382 = vmatpush1.msra.mxu0 0.0
    %383 = vmatprep.subr.mxu0 0.0
    %384 = vmatpush1.msra.mxu0 0.0
    %385 = vmatprep.subr.mxu0 0.0
    %386 = vmatpush1.msra.mxu0 0.0
    %387 = vmatprep.subr.mxu0 0.0
    %388 = vmatpush1.msra.mxu0 0.0
    %389 = vmatprep.subr.mxu0 0.0
    %390 = vmatpush1.msra.mxu0 0.0
    %391 = vmatprep.subr.mxu0 0.0
    %392 = vmatpush1.msra.mxu0 0.0
    %393 = vmatprep.subr.mxu0 0.0
    %394 = vmatpush1.msra.mxu0 0.0
    %395 = vmatprep.subr.mxu0 0.0
    %396 = vmatpush1.msra.mxu0 0.0
    %397 = vmatprep.subr.mxu0 0.0
    %398 = vmatpush1.msra.mxu0 0.0
    %399 = vmatprep.subr.mxu0 0.0
    %400 = vmatpush1.msra.mxu0 0.0
    %401 = vmatprep.subr.mxu0 0.0
    %402 = vmatpush1.msra.mxu0 0.0
    %403 = vmatprep.subr.mxu0 0.0
    %404 = vmatpush1.msra.mxu0 0.0
    %405 = vmatprep.subr.mxu0 0.0
    %406 = vmatpush1.msra.mxu0 0.0
    %407 = vmatprep.subr.mxu0 0.0
    %408 = vmatpush1.msra.mxu0 0.0
    %409 = vmatprep.subr.mxu0 0.0
    %410 = vmatpush1.msra.mxu0 0.0
    %411 = vmatprep.subr.mxu0 0.0
    %412 = vmatpush1.msra.mxu0 0.0
    %413 = vmatprep.subr.mxu0 0.0
    %414 = vmatpush1.msra.mxu0 0.0
    %415 = vmatprep.subr.mxu0 0.0
    %416 = vmatpush1.msra.mxu0 0.0
    %417 = vmatprep.subr.mxu0 0.0
    %418 = vmatpush1.msra.mxu0 0.0
    %419 = vmatprep.subr.mxu0 0.0
    %420 = vmatpush1.msra.mxu0 0.0
    %421 = vmatprep.mubr.f32.mxu0 0.0
    %422 = vmatmul.mubr.f32.gmra.mrb[0].mxu0 %v355
    %v423 = vpop.f32.mrb[0].mxu0
    %v424 = vadd.f32 %v352, %v423
    %v425 = vpop.f32.mrb[0].mxu0
    %426 = vdwg.mxu0
    %vm427 = vcmp.gt.f32.partialorder %v424, 20.0
    %v428 = vmin.f32 %v424, 20.0
    %v429 = vmul.f32 %v428, 1.442695
    %v430 = vpow.pop %v429
    %v431 = vadd.f32 %v430, 1.0
    %v432 = vlog2.pop %v431
    %v433 = vmul.f32 %v432, 0.6931472
    %v434 = vmul.f32 -0.5, %v430
    %v435 = vadd.f32 %v434, 1.0
    %v436 = vmul.f32 %v435, %v430
    %v437 = vand.u32 2147483647, %v430
    %vm438 = vcmp.lt.f32.partialorder %v437, 0.0004427343
    %v439 = vsel %vm438, %v436, %v433
    %v440 = vsel %vm427, %v424, %v439
    %vm441 = vcmask 64512
    %442 = vst.msk [vmem:[#allocation5] sm:$0xff] %vm441, %v440
    // Predicated region
    $region34: #{tpu_custom_call.1} parent=1 // pred_check
      _
    $region35: #{tpu_custom_call.1} parent=1 // pred_check_branch
      %444 = sbr.rel (0) target = $region37
    $region36: #{tpu_custom_call.1} parent=1 // pred_region
      %s446 = ssub.s32 128, 128
      %447 = vsyncadd [#allocation4], %s446
      %s449 = sshll.u32 [#allocation5], 4
      %s450 = int_to_ptr.vmem [resolvable:$true] %s449
      %452 = dma.vmem_to_hbm [thread:$0]  %s450, 128, %s7, [#allocation4]
    $region37: #{tpu_custom_call.1} parent=1 // pred_fallthru
      _
    // Predicated region
    $region38: #{tpu_custom_call.1} parent=1 // pred_check
      _
    $region39: #{tpu_custom_call.1} parent=1 // pred_check_branch
      %454 = sbr.rel (0) target = $region41
    $region40: #{tpu_custom_call.1} parent=1 // pred_region
      %455 = dma.done [#allocation4], 128
    $region41: #{tpu_custom_call.1} parent=1 // pred_fallthru
      _
    %456 = vsyncpa [#allocation3], 1
    %457 = vsyncpa [#allocation4], 1

// kernel: tpu_custom_call.1
$region0: #{tpu_custom_call.1}
  #allocation0 [shape = 'u32[]', space=smem, size = 0x4, offset = 0x4, fixed_abs, tag = 'smem constant byte address 0x4 - core index']
  #allocation1 [shape = 'u32[144,128]{1,0:T(1,128)}', space=vmem, size = 0x12000, scoped, tag = 'internal scratch']
  %s0 = inlined_call_operand.vmem [shape: f32[8,32], index: 0, kind: input, shape index: {}]
  %s1 = inlined_call_operand.hbm [shape: f32[24,32], index: 1, kind: input, shape index: {}]
  %s2 = inlined_call_operand.vmem [shape: f32[1,32], index: 2, kind: input, shape index: {}]
  %s3 = inlined_call_operand.vmem [shape: f32[32,32], index: 3, kind: input, shape index: {}]
  %s4 = inlined_call_operand.vmem [shape: f32[1,32], index: 4, kind: input, shape index: {}]
  %s5 = inlined_call_operand.vmem [shape: f32[32,8], index: 5, kind: input, shape index: {}]
  %s6 = inlined_call_operand.vmem [shape: f32[1,8], index: 6, kind: input, shape index: {}]
  %s7 = inlined_call_operand.hbm [shape: f32[8,8], index: 7, kind: output, shape index: {}]
  %s8 = sld [smem:[#allocation0]]
  $region42: #{tpu_custom_call.1} parent=0
    _
  %s10 = ssub.s32 1, %s8
  %s11 = scalar_select 0, %s10, %s8
  $region1: #{tpu_custom_call.1} parent=0
    #allocation2 [shape = 'u8[12288]{0}', space=vmem, size = 0x3000, scoped, tag = 'input window, operand 1, single buffered']
    #allocation3 [shape = 's32[1]{0}', space=sflag, size = 0x4, scoped, tag = 'scoped memory for tpu_custom_call.1']
    #allocation4 [shape = 's32[1]{0}', space=sflag, size = 0x4, scoped, tag = 'scoped memory for tpu_custom_call.1']
    #allocation5 [shape = 'u8[4096]{0}', space=vmem, size = 0x1000, scoped, tag = 'output window, operand 0, single buffered']
    %12 = vsyncpa [#allocation3], 0
    %13 = vsyncpa [#allocation4], 0
    // Predicated region
    $region2: #{tpu_custom_call.1} parent=1 // pred_check
      _
    $region3: #{tpu_custom_call.1} parent=1 // pred_check_branch
      %15 = sbr.rel (0) target = $region5
    $region4: #{tpu_custom_call.1} parent=1 // pred_region
      _
    $region5: #{tpu_custom_call.1} parent=1 // pred_fallthru
      _
    // Predicated region
    $region6: #{tpu_custom_call.1} parent=1 // pred_check
      _
    $region7: #{tpu_custom_call.1} parent=1 // pred_check_branch
      %17 = sbr.rel (0) target = $region9
    $region8: #{tpu_custom_call.1} parent=1 // pred_region
      %s19 = ssub.s32 384, 384
      %20 = vsyncadd [#allocation3], %s19
      %s21 = sshll.u32 [#allocation2], 4
      %s22 = int_to_ptr.vmem [resolvable:$true] %s21
      %27 = dma.hbm_to_vmem [thread:$0]  %s1, 384, %s22, [#allocation3], 128, 128, 8
    $region9: #{tpu_custom_call.1} parent=1 // pred_fallthru
      _
    // Predicated region
    $region10: #{tpu_custom_call.1} parent=1 // pred_check
      _
    $region11: #{tpu_custom_call.1} parent=1 // pred_check_branch
      %29 = sbr.rel (0) target = $region13
    $region12: #{tpu_custom_call.1} parent=1 // pred_region
      _
    $region13: #{tpu_custom_call.1} parent=1 // pred_fallthru
      _
    // Predicated region
    $region14: #{tpu_custom_call.1} parent=1 // pred_check
      _
    $region15: #{tpu_custom_call.1} parent=1 // pred_check_branch
      %31 = sbr.rel (0) target = $region17
    $region16: #{tpu_custom_call.1} parent=1 // pred_region
      _
    $region17: #{tpu_custom_call.1} parent=1 // pred_fallthru
      _
    // Predicated region
    $region18: #{tpu_custom_call.1} parent=1 // pred_check
      _
    $region19: #{tpu_custom_call.1} parent=1 // pred_check_branch
      %33 = sbr.rel (0) target = $region21
    $region20: #{tpu_custom_call.1} parent=1 // pred_region
      _
    $region21: #{tpu_custom_call.1} parent=1 // pred_fallthru
      _
    // Predicated region
    $region22: #{tpu_custom_call.1} parent=1 // pred_check
      _
    $region23: #{tpu_custom_call.1} parent=1 // pred_check_branch
      %35 = sbr.rel (0) target = $region25
    $region24: #{tpu_custom_call.1} parent=1 // pred_region
      _
    $region25: #{tpu_custom_call.1} parent=1 // pred_fallthru
      _
    // Predicated region
    $region26: #{tpu_custom_call.1} parent=1 // pred_check
      _
    $region27: #{tpu_custom_call.1} parent=1 // pred_check_branch
      %37 = sbr.rel (0) target = $region29
    $region28: #{tpu_custom_call.1} parent=1 // pred_region
      _
    $region29: #{tpu_custom_call.1} parent=1 // pred_fallthru
      _
    // Predicated region
    $region30: #{tpu_custom_call.1} parent=1 // pred_check
      _
    $region31: #{tpu_custom_call.1} parent=1 // pred_check_branch
      %39 = sbr.rel (0) target = $region33
    $region32: #{tpu_custom_call.1} parent=1 // pred_region
      %40 = dma.done [#allocation3], 384
    $region33: #{tpu_custom_call.1} parent=1 // pred_fallthru
      _
    %v41 = vld [vmem:[%s0] sm:$0xff]
    %vm42 = vcmask 261120
    %v43 = vsel %vm42, %v41, 0.0
    %44 = vadd.xlane.f32.xlu0 %v43
    %v45 = vpop.xlane.xlu0 %44
    %v46 = vrcp.pop 32.0
    %v47 = vmul.f32 %v45, %v46
    %v48 = vsub.f32 %v41, %v47
    %v49 = vmul.f32 %v48, %v48
    %v50 = vlaneseq
    %v51 = vshrl.u32 %v50, 7
    %v52 = vadd.s32 %v51, 8
    %v53 = vadd.s32 %v51, 16
    %v54 = vadd.s32 %v51, 24
    %v55 = vlaneseq
    %v56 = vand.u32 %v55, 127
    %v57 = vadd.s32 %v56, 1
    %vm58 = vcmp.ge.s32.totalorder %v51, %v57
    %vm59 = vcmp.ge.s32.totalorder %v52, %v57
    %vm60 = vcmp.ge.s32.totalorder %v53, %v57
    %vm61 = vcmp.ge.s32.totalorder %v54, %v57
    %v62 = vadd.s32 %v56, 8
    %vm63 = vcmp.le.s32.totalorder %v51, %v62
    %vm64 = vcmp.le.s32.totalorder %v52, %v62
    %vm65 = vcmp.le.s32.totalorder %v53, %v62
    %vm66 = vcmp.le.s32.totalorder %v54, %v62
    %vm67 = vmand %vm58, %vm63
    %vm68 = vmand %vm59, %vm64
    %vm69 = vmand %vm60, %vm65
    %vm70 = vmand %vm61, %vm66
    %v71 = vsel %vm67, 1, 0
    %v72 = vsel %vm68, 1, 0
    %v73 = vsel %vm69, 1, 0
    %v74 = vsel %vm70, 1, 0
    %v75 = vcvt.s32.f32 %v71
    %v76 = vcvt.s32.f32 %v72
    %v77 = vcvt.s32.f32 %v73
    %v78 = vcvt.s32.f32 %v74
    %v80 = vsel %vm42, %v48, 0
    %v83 = vsel %vm42, %v49, 0
    %85 = vmatprep.subr.mxu0 0.0
    %86 = vmatpush1.msra.mxu0 %v75
    %87 = vmatprep.subr.mxu0 0.0
    %88 = vmatpush1.msra.mxu0 %v76
    %89 = vmatprep.subr.mxu0 0.0
    %90 = vmatpush1.msra.mxu0 %v77
    %91 = vmatprep.subr.mxu0 0.0
    %92 = vmatpush1.msra.mxu0 %v78
    %93 = vmatprep.subr.mxu0 0.0
    %94 = vmatpush1.msra.mxu0 0.0
    %95 = vmatprep.subr.mxu0 0.0
    %96 = vmatpush1.msra.mxu0 0.0
    %97 = vmatprep.subr.mxu0 0.0
    %98 = vmatpush1.msra.mxu0 0.0
    %99 = vmatprep.subr.mxu0 0.0
    %100 = vmatpush1.msra.mxu0 0.0
    %101 = vmatprep.subr.mxu0 0.0
    %102 = vmatpush1.msra.mxu0 0.0
    %103 = vmatprep.subr.mxu0 0.0
    %104 = vmatpush1.msra.mxu0 0.0
    %105 = vmatprep.subr.mxu0 0.0
    %106 = vmatpush1.msra.mxu0 0.0
    %107 = vmatprep.subr.mxu0 0.0
    %108 = vmatpush1.msra.mxu0 0.0
    %109 = vmatprep.subr.mxu0 0.0
    %110 = vmatpush1.msra.mxu0 0.0
    %111 = vmatprep.subr.mxu0 0.0
    %112 = vmatpush1.msra.mxu0 0.0
    %113 = vmatprep.subr.mxu0 0.0
    %114 = vmatpush1.msra.mxu0 0.0
    %115 = vmatprep.subr.mxu0 0.0
    %116 = vmatpush1.msra.mxu0 0.0
    %117 = vmatprep.subr.mxu0 0.0
    %118 = vmatpush1.msra.mxu0 0.0
    %119 = vmatprep.subr.mxu0 0.0
    %120 = vmatpush1.msra.mxu0 0.0
    %121 = vmatprep.subr.mxu0 0.0
    %122 = vmatpush1.msra.mxu0 0.0
    %123 = vmatprep.subr.mxu0 0.0
    %124 = vmatpush1.msra.mxu0 0.0
    %125 = vmatprep.subr.mxu0 0.0
    %126 = vmatpush1.msra.mxu0 0.0
    %127 = vmatprep.subr.mxu0 0.0
    %128 = vmatpush1.msra.mxu0 0.0
    %129 = vmatprep.subr.mxu0 0.0
    %130 = vmatpush1.msra.mxu0 0.0
    %131 = vmatprep.subr.mxu0 0.0
    %132 = vmatpush1.msra.mxu0 0.0
    %133 = vmatprep.subr.mxu0 0.0
    %134 = vmatpush1.msra.mxu0 0.0
    %135 = vmatprep.subr.mxu0 0.0
    %136 = vmatpush1.msra.mxu0 0.0
    %137 = vmatprep.subr.mxu0 0.0
    %138 = vmatpush1.msra.mxu0 0.0
    %139 = vmatprep.subr.mxu0 0.0
    %140 = vmatpush1.msra.mxu0 0.0
    %141 = vmatprep.subr.mxu0 0.0
    %142 = vmatpush1.msra.mxu0 0.0
    %143 = vmatprep.subr.mxu0 0.0
    %144 = vmatpush1.msra.mxu0 0.0
    %145 = vmatprep.subr.mxu0 0.0
    %146 = vmatpush1.msra.mxu0 0.0
    %147 = vmatprep.subr.mxu0 0.0
    %148 = vmatpush1.msra.mxu0 0.0
    %149 = vmatprep.mubr.f32.mxu0 0.0
    %150 = vmatmul.mubr.f32.gmra.mrb[0].mxu0 %v80
    %v151 = vpop.f32.mrb[0].mxu0
    %v152 = vadd.f32 0.0, %v151
    %v153 = vpop.f32.mrb[0].mxu0
    %154 = vmatprep.mubr.f32.mxu0 0.0
    %155 = vmatmul.mubr.f32.gmra.mrb[0].mxu0 %v83
    %v156 = vpop.f32.mrb[0].mxu0
    %v157 = vadd.f32 0.0, %v156
    %v158 = vpop.f32.mrb[0].mxu0
    %159 = vdwg.mxu0
    %v160 = vmul.f32 %v152, 0.125
    %v161 = vmul.f32 %v157, 0.125
    %v162 = vmul.f32 %v160, %v160
    %v163 = vsub.f32 %v161, %v162
    %v164 = vmax.f32 %v163, 0.0
    %v165 = vrsqrt.pop %v164
    %v166 = vmul.f32 %v164, %v165
    %vm167 = vcmp.eq.f32.partialorder %v164, inf
    %v168 = vsel %vm167, %v164, %v166
    %vm169 = vcmp.eq.f32.partialorder %v164, 0.0
    %v170 = vand.u32 %v164, 2147483648
    %v171 = vsel %vm169, %v170, %v168
    %v172 = vadd.f32 %v171, 1e-07
    %v173 = vld [vmem:[#allocation2] sm:$0xff]
    %v174 = vld [vmem:[#allocation2 + $0x8] sm:$0xff]
    %v175 = vld [vmem:[#allocation2 + $0x10] sm:$0xff]
    %v176 = vld [vmem:[%s2] sm:$0x1]
    %v178 = vlaneseq
    %v179 = vshrl.u32 %v178, 7
    %v180 = vsub.s32 0, %v179
    %v181 = vrot.slane %v176, %v180
    %vm183 = vcmask 195584
    %v185 = vsel %vm183, %v172, 0
    %187 = vmatprep.subr.mxu0 0.0
    %188 = vmatpush1.msra.mxu0 %v173
    %189 = vmatprep.subr.mxu0 0.0
    %190 = vmatpush1.msra.mxu0 %v174
    %191 = vmatprep.subr.mxu0 0.0
    %192 = vmatpush1.msra.mxu0 %v175
    %193 = vmatprep.subr.mxu0 0.0
    %194 = vmatpush1.msra.mxu0 0.0
    %195 = vmatprep.subr.mxu0 0.0
    %196 = vmatpush1.msra.mxu0 0.0
    %197 = vmatprep.subr.mxu0 0.0
    %198 = vmatpush1.msra.mxu0 0.0
    %199 = vmatprep.subr.mxu0 0.0
    %200 = vmatpush1.msra.mxu0 0.0
    %201 = vmatprep.subr.mxu0 0.0
    %202 = vmatpush1.msra.mxu0 0.0
    %203 = vmatprep.subr.mxu0 0.0
    %204 = vmatpush1.msra.mxu0 0.0
    %205 = vmatprep.subr.mxu0 0.0
    %206 = vmatpush1.msra.mxu0 0.0
    %207 = vmatprep.subr.mxu0 0.0
    %208 = vmatpush1.msra.mxu0 0.0
    %209 = vmatprep.subr.mxu0 0.0
    %210 = vmatpush1.msra.mxu0 0.0
    %211 = vmatprep.subr.mxu0 0.0
    %212 = vmatpush1.msra.mxu0 0.0
    %213 = vmatprep.subr.mxu0 0.0
    %214 = vmatpush1.msra.mxu0 0.0
    %215 = vmatprep.subr.mxu0 0.0
    %216 = vmatpush1.msra.mxu0 0.0
    %217 = vmatprep.subr.mxu0 0.0
    %218 = vmatpush1.msra.mxu0 0.0
    %219 = vmatprep.subr.mxu0 0.0
    %220 = vmatpush1.msra.mxu0 0.0
    %221 = vmatprep.subr.mxu0 0.0
    %222 = vmatpush1.msra.mxu0 0.0
    %223 = vmatprep.subr.mxu0 0.0
    %224 = vmatpush1.msra.mxu0 0.0
    %225 = vmatprep.subr.mxu0 0.0
    %226 = vmatpush1.msra.mxu0 0.0
    %227 = vmatprep.subr.mxu0 0.0
    %228 = vmatpush1.msra.mxu0 0.0
    %229 = vmatprep.subr.mxu0 0.0
    %230 = vmatpush1.msra.mxu0 0.0
    %231 = vmatprep.subr.mxu0 0.0
    %232 = vmatpush1.msra.mxu0 0.0
    %233 = vmatprep.subr.mxu0 0.0
    %234 = vmatpush1.msra.mxu0 0.0
    %235 = vmatprep.subr.mxu0 0.0
    %236 = vmatpush1.msra.mxu0 0.0
    %237 = vmatprep.subr.mxu0 0.0
    %238 = vmatpush1.msra.mxu0 0.0
    %239 = vmatprep.subr.mxu0 0.0
    %240 = vmatpush1.msra.mxu0 0.0
    %241 = vmatprep.subr.mxu0 0.0
    %242 = vmatpush1.msra.mxu0 0.0
    %243 = vmatprep.subr.mxu0 0.0
    %244 = vmatpush1.msra.mxu0 0.0
    %245 = vmatprep.subr.mxu0 0.0
    %246 = vmatpush1.msra.mxu0 0.0
    %247 = vmatprep.subr.mxu0 0.0
    %248 = vmatpush1.msra.mxu0 0.0
    %249 = vmatprep.subr.mxu0 0.0
    %250 = vmatpush1.msra.mxu0 0.0
    %251 = vmatprep.mubr.f32.mxu0 0.0
    %252 = vmatmul.mubr.f32.gmra.mrb[0].mxu0 %v185
    %v253 = vpop.f32.mrb[0].mxu0
    %v254 = vadd.f32 %v181, %v253
    %v255 = vpop.f32.mrb[0].mxu0
    %256 = vdwg.mxu0
    %v257 = vmax.f32 %v254, 0.0
    %v258 = vld [vmem:[%s3] sm:$0xff]
    %v259 = vld [vmem:[%s3 + $0x8] sm:$0xff]
    %v260 = vld [vmem:[%s3 + $0x10] sm:$0xff]
    %v261 = vld [vmem:[%s3 + $0x18] sm:$0xff]
    %v262 = vld [vmem:[%s4] sm:$0x1]
    %v264 = vlaneseq
    %v265 = vshrl.u32 %v264, 7
    %v266 = vsub.s32 0, %v265
    %v267 = vrot.slane %v262, %v266
    %v270 = vsel %vm42, %v257, 0
    %272 = vmatprep.subr.mxu0 0.0
    %273 = vmatpush1.msra.mxu0 %v258
    %274 = vmatprep.subr.mxu0 0.0
    %275 = vmatpush1.msra.mxu0 %v259
    %276 = vmatprep.subr.mxu0 0.0
    %277 = vmatpush1.msra.mxu0 %v260
    %278 = vmatprep.subr.mxu0 0.0
    %279 = vmatpush1.msra.mxu0 %v261
    %280 = vmatprep.subr.mxu0 0.0
    %281 = vmatpush1.msra.mxu0 0.0
    %282 = vmatprep.subr.mxu0 0.0
    %283 = vmatpush1.msra.mxu0 0.0
    %284 = vmatprep.subr.mxu0 0.0
    %285 = vmatpush1.msra.mxu0 0.0
    %286 = vmatprep.subr.mxu0 0.0
    %287 = vmatpush1.msra.mxu0 0.0
    %288 = vmatprep.subr.mxu0 0.0
    %289 = vmatpush1.msra.mxu0 0.0
    %290 = vmatprep.subr.mxu0 0.0
    %291 = vmatpush1.msra.mxu0 0.0
    %292 = vmatprep.subr.mxu0 0.0
    %293 = vmatpush1.msra.mxu0 0.0
    %294 = vmatprep.subr.mxu0 0.0
    %295 = vmatpush1.msra.mxu0 0.0
    %296 = vmatprep.subr.mxu0 0.0
    %297 = vmatpush1.msra.mxu0 0.0
    %298 = vmatprep.subr.mxu0 0.0
    %299 = vmatpush1.msra.mxu0 0.0
    %300 = vmatprep.subr.mxu0 0.0
    %301 = vmatpush1.msra.mxu0 0.0
    %302 = vmatprep.subr.mxu0 0.0
    %303 = vmatpush1.msra.mxu0 0.0
    %304 = vmatprep.subr.mxu0 0.0
    %305 = vmatpush1.msra.mxu0 0.0
    %306 = vmatprep.subr.mxu0 0.0
    %307 = vmatpush1.msra.mxu0 0.0
    %308 = vmatprep.subr.mxu0 0.0
    %309 = vmatpush1.msra.mxu0 0.0
    %310 = vmatprep.subr.mxu0 0.0
    %311 = vmatpush1.msra.mxu0 0.0
    %312 = vmatprep.subr.mxu0 0.0
    %313 = vmatpush1.msra.mxu0 0.0
    %314 = vmatprep.subr.mxu0 0.0
    %315 = vmatpush1.msra.mxu0 0.0
    %316 = vmatprep.subr.mxu0 0.0
    %317 = vmatpush1.msra.mxu0 0.0
    %318 = vmatprep.subr.mxu0 0.0
    %319 = vmatpush1.msra.mxu0 0.0
    %320 = vmatprep.subr.mxu0 0.0
    %321 = vmatpush1.msra.mxu0 0.0
    %322 = vmatprep.subr.mxu0 0.0
    %323 = vmatpush1.msra.mxu0 0.0
    %324 = vmatprep.subr.mxu0 0.0
    %325 = vmatpush1.msra.mxu0 0.0
    %326 = vmatprep.subr.mxu0 0.0
    %327 = vmatpush1.msra.mxu0 0.0
    %328 = vmatprep.subr.mxu0 0.0
    %329 = vmatpush1.msra.mxu0 0.0
    %330 = vmatprep.subr.mxu0 0.0
    %331 = vmatpush1.msra.mxu0 0.0
    %332 = vmatprep.subr.mxu0 0.0
    %333 = vmatpush1.msra.mxu0 0.0
    %334 = vmatprep.subr.mxu0 0.0
    %335 = vmatpush1.msra.mxu0 0.0
    %336 = vmatprep.mubr.f32.mxu0 0.0
    %337 = vmatmul.mubr.f32.gmra.mrb[0].mxu0 %v270
    %v338 = vpop.f32.mrb[0].mxu0
    %v339 = vadd.f32 %v267, %v338
    %v340 = vpop.f32.mrb[0].mxu0
    %341 = vdwg.mxu0
    %v342 = vmax.f32 %v339, 0.0
    %v343 = vld [vmem:[%s5] sm:$0xff]
    %v344 = vld [vmem:[%s5 + $0x8] sm:$0xff]
    %v345 = vld [vmem:[%s5 + $0x10] sm:$0xff]
    %v346 = vld [vmem:[%s5 + $0x18] sm:$0xff]
    %v347 = vld [vmem:[%s6] sm:$0x1]
    %v349 = vlaneseq
    %v350 = vshrl.u32 %v349, 7
    %v351 = vsub.s32 0, %v350
    %v352 = vrot.slane %v347, %v351
    %v355 = vsel %vm42, %v342, 0
    %357 = vmatprep.subr.mxu0 0.0
    %358 = vmatpush1.msra.mxu0 %v343
    %359 = vmatprep.subr.mxu0 0.0
    %360 = vmatpush1.msra.mxu0 %v344
    %361 = vmatprep.subr.mxu0 0.0
    %362 = vmatpush1.msra.mxu0 %v345
    %363 = vmatprep.subr.mxu0 0.0
    %364 = vmatpush1.msra.mxu0 %v346
    %365 = vmatprep.subr.mxu0 0.0
    %366 = vmatpush1.msra.mxu0 0.0
    %367 = vmatprep.subr.mxu0 0.0
    %368 = vmatpush1.msra.mxu0 0.0
    %369 = vmatprep.subr.mxu0 0.0
    %370 = vmatpush1.msra.mxu0 0.0
    %371 = vmatprep.subr.mxu0 0.0
    %372 = vmatpush1.msra.mxu0 0.0
    %373 = vmatprep.subr.mxu0 0.0
    %374 = vmatpush1.msra.mxu0 0.0
    %375 = vmatprep.subr.mxu0 0.0
    %376 = vmatpush1.msra.mxu0 0.0
    %377 = vmatprep.subr.mxu0 0.0
    %378 = vmatpush1.msra.mxu0 0.0
    %379 = vmatprep.subr.mxu0 0.0
    %380 = vmatpush1.msra.mxu0 0.0
    %381 = vmatprep.subr.mxu0 0.0
    %382 = vmatpush1.msra.mxu0 0.0
    %383 = vmatprep.subr.mxu0 0.0
    %384 = vmatpush1.msra.mxu0 0.0
    %385 = vmatprep.subr.mxu0 0.0
    %386 = vmatpush1.msra.mxu0 0.0
    %387 = vmatprep.subr.mxu0 0.0
    %388 = vmatpush1.msra.mxu0 0.0
    %389 = vmatprep.subr.mxu0 0.0
    %390 = vmatpush1.msra.mxu0 0.0
    %391 = vmatprep.subr.mxu0 0.0
    %392 = vmatpush1.msra.mxu0 0.0
    %393 = vmatprep.subr.mxu0 0.0
    %394 = vmatpush1.msra.mxu0 0.0
    %395 = vmatprep.subr.mxu0 0.0
    %396 = vmatpush1.msra.mxu0 0.0
    %397 = vmatprep.subr.mxu0 0.0
    %398 = vmatpush1.msra.mxu0 0.0
    %399 = vmatprep.subr.mxu0 0.0
    %400 = vmatpush1.msra.mxu0 0.0
    %401 = vmatprep.subr.mxu0 0.0
    %402 = vmatpush1.msra.mxu0 0.0
    %403 = vmatprep.subr.mxu0 0.0
    %404 = vmatpush1.msra.mxu0 0.0
    %405 = vmatprep.subr.mxu0 0.0
    %406 = vmatpush1.msra.mxu0 0.0
    %407 = vmatprep.subr.mxu0 0.0
    %408 = vmatpush1.msra.mxu0 0.0
    %409 = vmatprep.subr.mxu0 0.0
    %410 = vmatpush1.msra.mxu0 0.0
    %411 = vmatprep.subr.mxu0 0.0
    %412 = vmatpush1.msra.mxu0 0.0
    %413 = vmatprep.subr.mxu0 0.0
    %414 = vmatpush1.msra.mxu0 0.0
    %415 = vmatprep.subr.mxu0 0.0
    %416 = vmatpush1.msra.mxu0 0.0
    %417 = vmatprep.subr.mxu0 0.0
    %418 = vmatpush1.msra.mxu0 0.0
    %419 = vmatprep.subr.mxu0 0.0
    %420 = vmatpush1.msra.mxu0 0.0
    %421 = vmatprep.mubr.f32.mxu0 0.0
    %422 = vmatmul.mubr.f32.gmra.mrb[0].mxu0 %v355
    %v423 = vpop.f32.mrb[0].mxu0
    %v424 = vadd.f32 %v352, %v423
    %v425 = vpop.f32.mrb[0].mxu0
    %426 = vdwg.mxu0
    %vm427 = vcmp.gt.f32.partialorder %v424, 20.0
    %v428 = vmin.f32 %v424, 20.0
    %v429 = vmul.f32 %v428, 1.442695
    %v430 = vpow.pop %v429
    %v431 = vadd.f32 %v430, 1.0
    %v432 = vlog2.pop %v431
    %v433 = vmul.f32 %v432, 0.6931472
    %v434 = vmul.f32 -0.5, %v430
    %v435 = vadd.f32 %v434, 1.0
    %v436 = vmul.f32 %v435, %v430
    %v437 = vand.u32 2147483647, %v430
    %vm438 = vcmp.lt.f32.partialorder %v437, 0.0004427343
    %v439 = vsel %vm438, %v436, %v433
    %v440 = vsel %vm427, %v424, %v439
    %vm441 = vcmask 64512
    %442 = vst.msk [vmem:[#allocation5] sm:$0xff] %vm441, %v440
    // Predicated region
    $region34: #{tpu_custom_call.1} parent=1 // pred_check
      _
    $region35: #{tpu_custom_call.1} parent=1 // pred_check_branch
      %444 = sbr.rel (0) target = $region37
    $region36: #{tpu_custom_call.1} parent=1 // pred_region
      %s446 = ssub.s32 128, 128
      %447 = vsyncadd [#allocation4], %s446
      %s449 = sshll.u32 [#allocation5], 4
      %s450 = int_to_ptr.vmem [resolvable:$true] %s449
      %452 = dma.vmem_to_hbm [thread:$0]  %s450, 128, %s7, [#allocation4]
    $region37: #{tpu_custom_call.1} parent=1 // pred_fallthru
      _
    // Predicated region
    $region38: #{tpu_custom_call.1} parent=1 // pred_check
      _
    $region39: #{tpu_custom_call.1} parent=1 // pred_check_branch
      %454 = sbr.rel (0) target = $region41
    $region40: #{tpu_custom_call.1} parent=1 // pred_region
      %455 = dma.done [#allocation4], 128
    $region41: #{tpu_custom_call.1} parent=1 // pred_fallthru
      _
    %456 = vsyncpa [#allocation3], 1
    %457 = vsyncpa [#allocation4], 1

</llo_original>
